<compile_context>
chip_gen: v5e
topology: v5e:2x2
jax: 0.10.0
libtpu: 0.0.40
codegen_flags: <defaults>
</compile_context>

<pallas_src>
import functools

import jax
import jax.numpy as jnp
import numpy as np
from jax import lax
from jax.experimental import pallas as pl
from jax.experimental.pallas import tpu as pltpu
from jax.scipy.linalg import solve_triangular


def _round_up(x: int, m: int) -> int:
    return ((x + m - 1) // m) * m


# ----------------------------------------------------------------------------
# Fused single-pass kernel over the parameter (D) axis.
#   outputs (per core-parallel split c, accumulated over the k axis):
#     gram[c] = sum_k G_k G_k^T            (N, N)
#     p[c]    = sum_k (dlt_k - dltw_k) G_k^T   (W, N)
#     quad[c] = sum_k rowsum(d_k * d_k)    (W, 1)
# ----------------------------------------------------------------------------
def _fused_fisher_score_kernel(g_ref, dlt_ref, dltw_ref,
                               gram_ref, p_ref, quad_ref, *, mxu_dtype):
    k = pl.program_id(1)

    @pl.when(k == 0)
    def _init():
        gram_ref[...] = jnp.zeros_like(gram_ref)
        p_ref[...] = jnp.zeros_like(p_ref)
        quad_ref[...] = jnp.zeros_like(quad_ref)

    g = g_ref[...]                                   # (N, TK) f32 tile of G
    d = dlt_ref[...] - dltw_ref[...]                 # (W, TK) f32 candidate deltas

    # MXU operands (optionally bf16 for bandwidth/throughput; f32 accumulation).
    g_op = g.astype(mxu_dtype)
    d_op = d.astype(mxu_dtype)
    contract = (((1,), (1,)), ((), ()))              # contract the D (lane) axis

    gram_ref[...] += lax.dot_general(g_op, g_op, contract,
                                     preferred_element_type=jnp.float32)
    p_ref[...] += lax.dot_general(d_op, g_op, contract,
                                  preferred_element_type=jnp.float32)
    # Elementwise math stays f32 (no bf16 VPU on v5e).
    quad_ref[...] += jnp.sum(d * d, axis=-1, keepdims=True)


def fused_fisher_score_pass(fragment_grads, dlt_dA, dlt_w_dA, *,
                            block_k: int = 512, num_splits: int = 2,
                            mxu_dtype=jnp.float32):
    """Single pass over G.

    fragment_grads: (N, D); dlt_dA, dlt_w_dA: (W, D)
    Returns (gram (N,N), p (W,N), quad (W,)) with gram = G G^T, p = (dlt-dlt_w) G^T.
    """
    n, d_dim = fragment_grads.shape
    w = dlt_dA.shape[0]

    # D tiling: lane-aligned TK, zero-pad D so every (split, k) tile is full.
    tk = min(block_k, _round_up(d_dim, 128))
    kt_total = pl.cdiv(d_dim, tk)
    splits = num_splits if kt_total >= num_splits else 1
    kt_total = _round_up(kt_total, splits)
    d_pad = kt_total * tk
    kt_per_split = kt_total // splits

    if d_pad != d_dim:                               # zero-padding is exact here
        pad = [(0, 0), (0, d_pad - d_dim)]
        fragment_grads = jnp.pad(fragment_grads, pad)
        dlt_dA = jnp.pad(dlt_dA, pad)
        dlt_w_dA = jnp.pad(dlt_w_dA, pad)

    in_map = lambda c, k: (0, c * kt_per_split + k)
    out_map = lambda c, k: (c, 0, 0)                 # resident across k (accumulator)

    # VMEM budget: double-buffered input tiles + resident output blocks + slack;
    # never below the 32 MiB scoped default, capped under v7x's 64 MiB physical.
    step_bytes = (n + 2 * w) * tk * 4
    out_bytes = splits * (n * n + w * n + w) * 4
    vmem_limit = int(min(max(4 * step_bytes + 2 * out_bytes + (2 << 20),
                             32 * 1024 * 1024),
                         60 * 1024 * 1024))

    kernel = functools.partial(_fused_fisher_score_kernel, mxu_dtype=mxu_dtype)

    gram_p, p_p, quad_p = pl.pallas_call(
        kernel,
        out_shape=(jax.ShapeDtypeStruct((splits, n, n), jnp.float32),
                   jax.ShapeDtypeStruct((splits, w, n), jnp.float32),
                   jax.ShapeDtypeStruct((splits, w, 1), jnp.float32)),
        grid_spec=pltpu.PrefetchScalarGridSpec(
            num_scalar_prefetch=0,
            grid=(splits, kt_per_split),
            in_specs=[pl.BlockSpec((n, tk), in_map),     # G tile
                      pl.BlockSpec((w, tk), in_map),     # dlt tile
                      pl.BlockSpec((w, tk), in_map)],    # dlt_w tile
            out_specs=[pl.BlockSpec((None, n, n), out_map),
                       pl.BlockSpec((None, w, n), out_map),
                       pl.BlockSpec((None, w, 1), out_map)],
        ),
        compiler_params=pltpu.CompilerParams(
            dimension_semantics=("parallel", "arbitrary"),
            vmem_limit_bytes=vmem_limit),
        cost_estimate=pl.CostEstimate(
            flops=2 * n * n * d_pad + 2 * w * n * d_pad + 3 * w * d_pad,
            transcendentals=0,
            bytes_accessed=4 * (n + 2 * w) * d_pad + out_bytes),
    )(fragment_grads, dlt_dA, dlt_w_dA)

    # Cross-core / cross-split partial reduction (tiny, JAX glue).
    return gram_p.sum(axis=0), p_p.sum(axis=0), quad_p.sum(axis=0)[:, 0]


# ----------------------------------------------------------------------------
# Wrapper mirroring one window step of Score_statistics.forward, batched over
# W candidate change points that share the same fragment gradients.
# ----------------------------------------------------------------------------
@functools.partial(jax.jit, static_argnames=("block_k", "num_splits", "mxu_dtype"))
def score_statistics_window(fragment_grads, dlt_dA, dlt_w_dA, reg, window_length,
                            *, block_k: int = 512, num_splits: int = 2,
                            mxu_dtype=jnp.float32):
    """fragment_grads: (N_frag, D); dlt_dA, dlt_w_dA: (W, D) -> scores (W, 1)."""
    n_frag = fragment_grads.shape[0]
    w = dlt_dA.shape[0]
    reg = jnp.asarray(reg, jnp.float32)
    window_length = jnp.asarray(window_length, jnp.float32)

    gram, p, quad = fused_fisher_score_pass(
        fragment_grads, dlt_dA, dlt_w_dA,
        block_k=block_k, num_splits=num_splits, mxu_dtype=mxu_dtype)

    # Tiny (N_frag x N_frag) SPD capacitance system: M = N*reg*I + G G^T.
    m = gram + (jnp.float32(n_frag) * reg) * jnp.eye(n_frag, dtype=jnp.float32)
    chol = jnp.linalg.cholesky(m)                         # lower factor L
    y = solve_triangular(chol, p.T, lower=True)           # (N, W): y_w = L^{-1} p_w
    corr = jnp.sum(y * y, axis=0)                         # (W,): p_w M^{-1} p_w^T
    scores = jnp.maximum(quad - corr, 0.0) / (reg * window_length)
    return scores.reshape(w, 1)


if __name__ == "__main__":
    D = 128        # flattened parameter-gradient dimension (model-param surrogate)
    N_FRAG = 8     # opt.num_fragments_fisher_mat
    W = 8          # batch of candidate change-point windows scored together
    REG = 1e-3     # opt.reg_ss
    WINDOW = 4.0   # opt.window_length

    key = jax.random.PRNGKey(0)
    k1, k2, k3 = jax.random.split(key, 3)
    fragment_grads = jax.random.normal(k1, (N_FRAG, D), dtype=jnp.float32)
    dlt_dA = jax.random.normal(k2, (W, D), dtype=jnp.float32)    # grads after each cp
    dlt_w_dA = jax.random.normal(k3, (W, D), dtype=jnp.float32)  # grads before each cp

    scores = score_statistics_window(fragment_grads, dlt_dA, dlt_w_dA, REG, WINDOW)
    scores = jax.block_until_ready(scores)

    # float64 numpy reference of the original explicit-Fisher-inverse formula:
    #   F = G^T G / N + reg*I ;  s_w = d_w^T F^{-1} d_w / window_length
    g64 = np.asarray(fragment_grads, dtype=np.float64)
    fisher_ref = g64.T @ g64 / N_FRAG + REG * np.eye(D)
    finv_ref = np.linalg.inv(fisher_ref)
    d64 = np.asarray(dlt_dA, np.float64) - np.asarray(dlt_w_dA, np.float64)
    score_ref = np.einsum("wd,de,we->w", d64, finv_ref, d64) / WINDOW
    np.testing.assert_allclose(np.asarray(scores)[:, 0], score_ref, rtol=5e-3)

    # Check the fused single-pass outputs directly (Gram / projection / quad).
    gram, p, quad = jax.block_until_ready(
        fused_fisher_score_pass(fragment_grads, dlt_dA, dlt_w_dA))
    np.testing.assert_allclose(np.asarray(gram), g64 @ g64.T, rtol=1e-4, atol=1e-4)
    np.testing.assert_allclose(np.asarray(p), d64 @ g64.T, rtol=1e-4, atol=1e-4)
    np.testing.assert_allclose(np.asarray(quad), np.sum(d64 * d64, axis=1), rtol=1e-5)

    # Exercise the D-tiled + core-parallel path (multi-tile grid, padding, 2 splits).
    D2 = 640
    k4, k5, k6 = jax.random.split(jax.random.PRNGKey(1), 3)
    fg2 = jax.random.normal(k4, (N_FRAG, D2), dtype=jnp.float32)
    da2 = jax.random.normal(k5, (W, D2), dtype=jnp.float32)
    db2 = jax.random.normal(k6, (W, D2), dtype=jnp.float32)
    scores2 = jax.block_until_ready(
        score_statistics_window(fg2, da2, db2, REG, WINDOW,
                                block_k=256, num_splits=2))
    g64b = np.asarray(fg2, np.float64)
    fisher2 = g64b.T @ g64b / N_FRAG + REG * np.eye(D2)
    d64b = np.asarray(da2, np.float64) - np.asarray(db2, np.float64)
    ref2 = np.einsum("wd,de,we->w", d64b, np.linalg.inv(fisher2), d64b) / WINDOW
    np.testing.assert_allclose(np.asarray(scores2)[:, 0], ref2, rtol=5e-3)

    print("KERNEL_OK")
</pallas_src>

<mosaic_0001>
module attributes {stable_mosaic.version = 11 : i64} {
  func.func @_fused_fisher_score_kernel(%arg0: i32, %arg1: i32, %arg2: memref<8x128xf32, #tpu.memory_space<vmem>>, %arg3: memref<8x128xf32, #tpu.memory_space<vmem>>, %arg4: memref<8x128xf32, #tpu.memory_space<vmem>>, %arg5: memref<1x8x8xf32, #tpu.memory_space<vmem>>, %arg6: memref<1x8x8xf32, #tpu.memory_space<vmem>>, %arg7: memref<1x8x1xf32, #tpu.memory_space<vmem>>) attributes {dimension_semantics = [#tpu.dimension_semantics<parallel>, #tpu.dimension_semantics<arbitrary>], iteration_bounds = array<i64: 1, 1>, scalar_prefetch = 0 : i64, scratch_operands = 0 : i64, tpu.core_type = #tpu.core_type<tc>, window_params = [{transform_indices = @transform_0, window_bounds = array<i64: 8, 128>}, {transform_indices = @transform_1, window_bounds = array<i64: 8, 128>}, {transform_indices = @transform_2, window_bounds = array<i64: 8, 128>}, {transform_indices = @transform_3, window_bounds = array<i64: 1, 8, 8>}, {transform_indices = @transform_4, window_bounds = array<i64: 1, 8, 8>}, {transform_indices = @transform_5, window_bounds = array<i64: 1, 8, 1>}]} {
    %c0_i32 = arith.constant 0 : i32
    %0 = arith.cmpi eq, %arg1, %c0_i32 : i32
    %1 = arith.extui %0 : i1 to i32
    %c0_i32_0 = arith.constant 0 : i32
    %2 = arith.cmpi ne, %1, %c0_i32_0 : i32
    scf.if %2 {
      %cst_26 = arith.constant 0.000000e+00 : f32
      %30 = vector.broadcast %cst_26 : f32 to vector<8x8xf32>
      %c0_27 = arith.constant 0 : index
      %c0_28 = arith.constant 0 : index
      %c0_29 = arith.constant 0 : index
      %31 = vector.load %arg5[%c0_27, %c0_28, %c0_29] : memref<1x8x8xf32, #tpu.memory_space<vmem>>, vector<1x8x8xf32>
      %32 = vector.shape_cast %31 : vector<1x8x8xf32> to vector<8x8xf32>
      %33 = vector.shape_cast %30 : vector<8x8xf32> to vector<1x8x8xf32>
      tpu.vector_store %arg5[%c0_27, %c0_28, %c0_29], %33 {strides = array<i32>} : memref<1x8x8xf32, #tpu.memory_space<vmem>>, vector<1x8x8xf32>,
      %cst_30 = arith.constant 0.000000e+00 : f32
      %34 = vector.broadcast %cst_30 : f32 to vector<8x8xf32>
      %c0_31 = arith.constant 0 : index
      %c0_32 = arith.constant 0 : index
      %c0_33 = arith.constant 0 : index
      %35 = vector.load %arg6[%c0_31, %c0_32, %c0_33] : memref<1x8x8xf32, #tpu.memory_space<vmem>>, vector<1x8x8xf32>
      %36 = vector.shape_cast %35 : vector<1x8x8xf32> to vector<8x8xf32>
      %37 = vector.shape_cast %34 : vector<8x8xf32> to vector<1x8x8xf32>
      tpu.vector_store %arg6[%c0_31, %c0_32, %c0_33], %37 {strides = array<i32>} : memref<1x8x8xf32, #tpu.memory_space<vmem>>, vector<1x8x8xf32>,
      %cst_34 = arith.constant 0.000000e+00 : f32
      %38 = vector.broadcast %cst_34 : f32 to vector<8x1xf32>
      %c0_35 = arith.constant 0 : index
      %c0_36 = arith.constant 0 : index
      %c0_37 = arith.constant 0 : index
      %39 = vector.load %arg7[%c0_35, %c0_36, %c0_37] : memref<1x8x1xf32, #tpu.memory_space<vmem>>, vector<1x8x1xf32>
      %40 = vector.shape_cast %39 : vector<1x8x1xf32> to vector<8x1xf32>
      %41 = vector.shape_cast %38 : vector<8x1xf32> to vector<1x8x1xf32>
      tpu.vector_store %arg7[%c0_35, %c0_36, %c0_37], %41 {strides = array<i32>} : memref<1x8x1xf32, #tpu.memory_space<vmem>>, vector<1x8x1xf32>,
    } else {
    }
    %c0 = arith.constant 0 : index
    %c0_1 = arith.constant 0 : index
    %3 = vector.load %arg2[%c0, %c0_1] : memref<8x128xf32, #tpu.memory_space<vmem>>, vector<8x128xf32>
    %c0_2 = arith.constant 0 : index
    %c0_3 = arith.constant 0 : index
    %4 = vector.load %arg3[%c0_2, %c0_3] : memref<8x128xf32, #tpu.memory_space<vmem>>, vector<8x128xf32>
    %c0_4 = arith.constant 0 : index
    %c0_5 = arith.constant 0 : index
    %5 = vector.load %arg4[%c0_4, %c0_5] : memref<8x128xf32, #tpu.memory_space<vmem>>, vector<8x128xf32>
    %6 = arith.subf %4, %5 : vector<8x128xf32>
    %c0_6 = arith.constant 0 : index
    %c0_7 = arith.constant 0 : index
    %c0_8 = arith.constant 0 : index
    %7 = vector.load %arg5[%c0_6, %c0_7, %c0_8] : memref<1x8x8xf32, #tpu.memory_space<vmem>>, vector<1x8x8xf32>
    %8 = vector.shape_cast %7 : vector<1x8x8xf32> to vector<8x8xf32>
    %cst = arith.constant dense<0.000000e+00> : vector<8x8xf32>
    %9 = tpu.matmul %3, %3, %cst {dimension_numbers = #tpu.dot_dimension_numbers<[1], [1], [0], [0], [0, 0, 1, 0], [], []>} : vector<8x128xf32>, vector<8x128xf32>, vector<8x8xf32> -> vector<8x8xf32>
    %10 = arith.addf %8, %9 : vector<8x8xf32>
    %c0_9 = arith.constant 0 : index
    %c0_10 = arith.constant 0 : index
    %c0_11 = arith.constant 0 : index
    %11 = vector.load %arg5[%c0_9, %c0_10, %c0_11] : memref<1x8x8xf32, #tpu.memory_space<vmem>>, vector<1x8x8xf32>
    %12 = vector.shape_cast %11 : vector<1x8x8xf32> to vector<8x8xf32>
    %13 = vector.shape_cast %10 : vector<8x8xf32> to vector<1x8x8xf32>
    tpu.vector_store %arg5[%c0_9, %c0_10, %c0_11], %13 {strides = array<i32>} : memref<1x8x8xf32, #tpu.memory_space<vmem>>, vector<1x8x8xf32>,
    %c0_12 = arith.constant 0 : index
    %c0_13 = arith.constant 0 : index
    %c0_14 = arith.constant 0 : index
    %14 = vector.load %arg6[%c0_12, %c0_13, %c0_14] : memref<1x8x8xf32, #tpu.memory_space<vmem>>, vector<1x8x8xf32>
    %15 = vector.shape_cast %14 : vector<1x8x8xf32> to vector<8x8xf32>
    %cst_15 = arith.constant dense<0.000000e+00> : vector<8x8xf32>
    %16 = tpu.matmul %6, %3, %cst_15 {dimension_numbers = #tpu.dot_dimension_numbers<[1], [1], [0], [0], [0, 0, 1, 0], [], []>} : vector<8x128xf32>, vector<8x128xf32>, vector<8x8xf32> -> vector<8x8xf32>
    %17 = arith.addf %15, %16 : vector<8x8xf32>
    %c0_16 = arith.constant 0 : index
    %c0_17 = arith.constant 0 : index
    %c0_18 = arith.constant 0 : index
    %18 = vector.load %arg6[%c0_16, %c0_17, %c0_18] : memref<1x8x8xf32, #tpu.memory_space<vmem>>, vector<1x8x8xf32>
    %19 = vector.shape_cast %18 : vector<1x8x8xf32> to vector<8x8xf32>
    %20 = vector.shape_cast %17 : vector<8x8xf32> to vector<1x8x8xf32>
    tpu.vector_store %arg6[%c0_16, %c0_17, %c0_18], %20 {strides = array<i32>} : memref<1x8x8xf32, #tpu.memory_space<vmem>>, vector<1x8x8xf32>,
    %c0_19 = arith.constant 0 : index
    %c0_20 = arith.constant 0 : index
    %c0_21 = arith.constant 0 : index
    %21 = vector.load %arg7[%c0_19, %c0_20, %c0_21] : memref<1x8x1xf32, #tpu.memory_space<vmem>>, vector<1x8x1xf32>
    %22 = vector.shape_cast %21 : vector<1x8x1xf32> to vector<8x1xf32>
    %23 = arith.mulf %6, %6 : vector<8x128xf32>
    %cst_22 = arith.constant dense<0.000000e+00> : vector<8xf32>
    %24 = vector.multi_reduction <add>, %23, %cst_22 [1] : vector<8x128xf32> to vector<8xf32>
    %25 = vector.shape_cast %24 : vector<8xf32> to vector<8x1xf32>
    %26 = arith.addf %22, %25 : vector<8x1xf32>
    %c0_23 = arith.constant 0 : index
    %c0_24 = arith.constant 0 : index
    %c0_25 = arith.constant 0 : index
    %27 = vector.load %arg7[%c0_23, %c0_24, %c0_25] : memref<1x8x1xf32, #tpu.memory_space<vmem>>, vector<1x8x1xf32>
    %28 = vector.shape_cast %27 : vector<1x8x1xf32> to vector<8x1xf32>
    %29 = vector.shape_cast %26 : vector<8x1xf32> to vector<1x8x1xf32>
    tpu.vector_store %arg7[%c0_23, %c0_24, %c0_25], %29 {strides = array<i32>} : memref<1x8x1xf32, #tpu.memory_space<vmem>>, vector<1x8x1xf32>,
    return
  }
  func.func @transform_0(%arg0: i32, %arg1: i32) -> (i32, i32) {
    %c1_i32 = arith.constant 1 : i32
    %0 = arith.muli %arg0, %c1_i32 : i32
    %1 = arith.addi %0, %arg1 : i32
    %c0_i32 = arith.constant 0 : i32
    %c0_i32_0 = arith.constant 0 : i32
    return %c0_i32, %1 : i32, i32
  }
  func.func @transform_1(%arg0: i32, %arg1: i32) -> (i32, i32) {
    %c1_i32 = arith.constant 1 : i32
    %0 = arith.muli %arg0, %c1_i32 : i32
    %1 = arith.addi %0, %arg1 : i32
    %c0_i32 = arith.constant 0 : i32
    %c0_i32_0 = arith.constant 0 : i32
    return %c0_i32, %1 : i32, i32
  }
  func.func @transform_2(%arg0: i32, %arg1: i32) -> (i32, i32) {
    %c1_i32 = arith.constant 1 : i32
    %0 = arith.muli %arg0, %c1_i32 : i32
    %1 = arith.addi %0, %arg1 : i32
    %c0_i32 = arith.constant 0 : i32
    %c0_i32_0 = arith.constant 0 : i32
    return %c0_i32, %1 : i32, i32
  }
  func.func @transform_3(%arg0: i32, %arg1: i32) -> (i32, i32, i32) {
    %c0_i32 = arith.constant 0 : i32
    %c0_i32_0 = arith.constant 0 : i32
    %c0_i32_1 = arith.constant 0 : i32
    return %arg0, %c0_i32, %c0_i32_0 : i32, i32, i32
  }
  func.func @transform_4(%arg0: i32, %arg1: i32) -> (i32, i32, i32) {
    %c0_i32 = arith.constant 0 : i32
    %c0_i32_0 = arith.constant 0 : i32
    %c0_i32_1 = arith.constant 0 : i32
    return %arg0, %c0_i32, %c0_i32_0 : i32, i32, i32
  }
  func.func @transform_5(%arg0: i32, %arg1: i32) -> (i32, i32, i32) {
    %c0_i32 = arith.constant 0 : i32
    %c0_i32_0 = arith.constant 0 : i32
    %c0_i32_1 = arith.constant 0 : i32
    return %arg0, %c0_i32, %c0_i32_0 : i32, i32, i32
  }
}

</mosaic_0001>

<llo_original>
// kernel: custom-call.4
$region0: #{custom-call.4}
  %s0 = inlined_call_operand.vmem [shape: f32[8,8], index: 0, kind: input, shape index: {}]
  %s1 = inlined_call_operand.vmem [shape: f32[8,8], index: 1, kind: output, shape index: {}]
  $region1: #{custom-call.4} parent=0
    #allocation0 [shape = 'u8[4096]{0}', space=vmem, size = 0x1000, scoped, tag = 'operand span for operand 0']
    #allocation1 [shape = 'u8[4096]{0}', space=vmem, size = 0x1000, scoped, tag = 'operand span for operand 1']
    // Predicated region
    $region2: #{custom-call.4} parent=1 // pred_check
      _
    $region3: #{custom-call.4} parent=1 // pred_check_branch
      %3 = sbr.rel (0) target = $region5
    $region4: #{custom-call.4} parent=1 // pred_region
      // Predicated region
      $region6: #{custom-call.4} parent=4 // pred_check
        _
      $region7: #{custom-call.4} parent=4 // pred_check_branch
        %5 = sbr.rel (0) target = $region9
      $region8: #{custom-call.4} parent=4 // pred_region
        // Predicated region
        $region21: #{custom-call.4} parent=8 // pred_check
          _
        $region22: #{custom-call.4} parent=8 // pred_check_branch
          %21 = sbr.rel (0) target = $region24
        $region23: #{custom-call.4} parent=8 // pred_region
          loop: start=0, step=1, limit=1
          $region25: #{custom-call.4} parent=23 // loop_pre_header
            _
          $region26: #{custom-call.4} parent=23 // loop_header
            %s23 = sphi 0, %s27
            %p24 = scmp.ge.s32.totalorder %s23, 1
            %s28 = sphi %s0, %s0
            %s29 = sphi [#allocation0], [#allocation0]
          $region27: #{custom-call.4} parent=23 // loop_header_branch
            %26 = sbr.rel (%p24) target = $region31
          $region28: #{custom-call.4} parent=23 // loop_body
            %v30 = vld [vmem:[%s28] sm:$0xff]
            %31 = vst [vmem:[%s29] sm:$0xff] %v30
          $region29: #{custom-call.4} parent=23 // loop_footer
            %s27 = sadd.s32 1, %s23
          $region30: #{custom-call.4} parent=23 // loop_footer_branch
            %22 = sbr.rel target = $region26
          $region31: #{custom-call.4} parent=23 // loop_exit
            _
        $region24: #{custom-call.4} parent=8 // pred_fallthru
          _
        // Predicated region
        $region32: #{custom-call.4} parent=8 // pred_check
          _
        $region33: #{custom-call.4} parent=8 // pred_check_branch
          %33 = sbr.rel target = $region35
        $region34: #{custom-call.4} parent=8 // pred_region
          _
        $region35: #{custom-call.4} parent=8 // pred_fallthru
          _
      $region9: #{custom-call.4} parent=4 // pred_fallthru
        _
      // Predicated region
      $region10: #{custom-call.4} parent=4 // pred_check
        _
      $region11: #{custom-call.4} parent=4 // pred_check_branch
        %7 = sbr.rel target = $region13
      $region12: #{custom-call.4} parent=4 // pred_region
        %s9 = ssub.s32 256, 1
        loop: start=0, step=1, limit=1
        $region14: #{custom-call.4} parent=12 // loop_pre_header
          _
        $region15: #{custom-call.4} parent=12 // loop_header
          %s11 = sphi 0, %s15
          %p12 = scmp.ge.s32.totalorder %s11, 1
          %s16 = sphi %s0, %s0
          %s17 = sphi [#allocation0], [#allocation0]
        $region16: #{custom-call.4} parent=12 // loop_header_branch
          %14 = sbr.rel (%p12) target = $region20
        $region17: #{custom-call.4} parent=12 // loop_body
          %v18 = vld [vmem:[%s16] sm:%s9]
          %19 = vst [vmem:[%s17] sm:%s9] %v18
        $region18: #{custom-call.4} parent=12 // loop_footer
          %s15 = sadd.s32 1, %s11
        $region19: #{custom-call.4} parent=12 // loop_footer_branch
          %10 = sbr.rel target = $region15
        $region20: #{custom-call.4} parent=12 // loop_exit
          _
      $region13: #{custom-call.4} parent=4 // pred_fallthru
        _
    $region5: #{custom-call.4} parent=1 // pred_fallthru
      _
    %34 = vnop
    %35 = vst [vmem:[#allocation1] sm:$0xff] 0.0
    %vm36 = vcmask 7168
    %v37 = vld [vmem:[#allocation1] ss:$0 sm:$0xff]
    %v38 = vld [vmem:[#allocation0] ss:$0 sm:$0xff]
    %v39 = vmul.f32 %v37, %v37
    %40 = vadd.xlane.f32.xlu0 %v39
    %v41 = vpop.xlane.xlu0 %40
    %v42 = vsub.f32 %v38, %v41
    %v43 = vrsqrt.pop %v42
    %v44 = vmul.f32 %v43, %v42
    %v45 = vmul.f32 %v44, %v43
    %v46 = vmul.f32 0.5, %v45
    %v47 = vsub.f32 1.5, %v46
    %v48 = vmul.f32 %v43, %v47
    %vm49 = vweird.f32 %v42
    %vm50 = vweird.f32 %v43
    %vm51 = vmor %vm49, %vm50
    %v52 = vsel %vm51, %v43, %v48
    %v53 = vld [vmem:[#allocation0] sm:$0xff]
    %v54 = vld [vmem:[#allocation1] sm:$0xff]
    %v55 = vmul.f32 %v54, %v37
    %56 = vadd.xlane.f32.xlu0 %v55
    %v57 = vpop.xlane.xlu0 %56
    %v58 = vsub.f32 %v53, %v57
    %v59 = vmul.f32 %v58, %v52
    %v60 = vsel %vm36, %v59, 0.0
    %v61 = vadd.f32 %v54, %v60
    %62 = vst [vmem:[#allocation1] sm:$0xff] %v61
    %vm63 = vcmask 15368
    %s64 = scalar_lea.vmem [#allocation1], 1
    %v65 = vld [vmem:[%s64] ss:$0 sm:$0xff]
    %s66 = scalar_lea.vmem [#allocation0], 1
    %v67 = vld [vmem:[%s66] ss:$0 sm:$0xff]
    %v68 = vmul.f32 %v65, %v65
    %69 = vadd.xlane.f32.xlu0 %v68
    %v70 = vpop.xlane.xlu0 %69
    %v71 = vsub.f32 %v67, %v70
    %v72 = vrsqrt.pop %v71
    %v73 = vmul.f32 %v72, %v71
    %v74 = vmul.f32 %v73, %v72
    %v75 = vmul.f32 0.5, %v74
    %v76 = vsub.f32 1.5, %v75
    %v77 = vmul.f32 %v72, %v76
    %vm78 = vweird.f32 %v71
    %vm79 = vweird.f32 %v72
    %vm80 = vmor %vm78, %vm79
    %v81 = vsel %vm80, %v72, %v77
    %v82 = vld [vmem:[#allocation0] sm:$0xff]
    %v83 = vld [vmem:[#allocation1] sm:$0xff]
    %v84 = vmul.f32 %v83, %v65
    %85 = vadd.xlane.f32.xlu0 %v84
    %v86 = vpop.xlane.xlu0 %85
    %v87 = vsub.f32 %v82, %v86
    %v88 = vmul.f32 %v87, %v81
    %vm89 = vcmask 1047553
    %vm90 = vmand %vm63, %vm89
    %v91 = vsel %vm90, %v88, 0.0
    %v92 = vadd.f32 %v83, %v91
    %93 = vst [vmem:[#allocation1] sm:$0xff] %v92
    %vm94 = vcmask 23568
    %s95 = scalar_lea.vmem [#allocation1], 2
    %v96 = vld [vmem:[%s95] ss:$0 sm:$0xff]
    %s97 = scalar_lea.vmem [#allocation0], 2
    %v98 = vld [vmem:[%s97] ss:$0 sm:$0xff]
    %v99 = vmul.f32 %v96, %v96
    %100 = vadd.xlane.f32.xlu0 %v99
    %v101 = vpop.xlane.xlu0 %100
    %v102 = vsub.f32 %v98, %v101
    %v103 = vrsqrt.pop %v102
    %v104 = vmul.f32 %v103, %v102
    %v105 = vmul.f32 %v104, %v103
    %v106 = vmul.f32 0.5, %v105
    %v107 = vsub.f32 1.5, %v106
    %v108 = vmul.f32 %v103, %v107
    %vm109 = vweird.f32 %v102
    %vm110 = vweird.f32 %v103
    %vm111 = vmor %vm109, %vm110
    %v112 = vsel %vm111, %v103, %v108
    %v113 = vld [vmem:[#allocation0] sm:$0xff]
    %v114 = vld [vmem:[#allocation1] sm:$0xff]
    %v115 = vmul.f32 %v114, %v96
    %116 = vadd.xlane.f32.xlu0 %v115
    %v117 = vpop.xlane.xlu0 %116
    %v118 = vsub.f32 %v113, %v117
    %v119 = vmul.f32 %v118, %v112
    %vm120 = vcmask 1047554
    %vm121 = vmand %vm94, %vm120
    %v122 = vsel %vm121, %v119, 0.0
    %v123 = vadd.f32 %v114, %v122
    %124 = vst [vmem:[#allocation1] sm:$0xff] %v123
    %vm125 = vcmask 31768
    %s126 = scalar_lea.vmem [#allocation1], 3
    %v127 = vld [vmem:[%s126] ss:$0 sm:$0xff]
    %s128 = scalar_lea.vmem [#allocation0], 3
    %v129 = vld [vmem:[%s128] ss:$0 sm:$0xff]
    %v130 = vmul.f32 %v127, %v127
    %131 = vadd.xlane.f32.xlu0 %v130
    %v132 = vpop.xlane.xlu0 %131
    %v133 = vsub.f32 %v129, %v132
    %v134 = vrsqrt.pop %v133
    %v135 = vmul.f32 %v134, %v133
    %v136 = vmul.f32 %v135, %v134
    %v137 = vmul.f32 0.5, %v136
    %v138 = vsub.f32 1.5, %v137
    %v139 = vmul.f32 %v134, %v138
    %vm140 = vweird.f32 %v133
    %vm141 = vweird.f32 %v134
    %vm142 = vmor %vm140, %vm141
    %v143 = vsel %vm142, %v134, %v139
    %v144 = vld [vmem:[#allocation0] sm:$0xff]
    %v145 = vld [vmem:[#allocation1] sm:$0xff]
    %v146 = vmul.f32 %v145, %v127
    %147 = vadd.xlane.f32.xlu0 %v146
    %v148 = vpop.xlane.xlu0 %147
    %v149 = vsub.f32 %v144, %v148
    %v150 = vmul.f32 %v149, %v143
    %vm151 = vcmask 1047555
    %vm152 = vmand %vm125, %vm151
    %v153 = vsel %vm152, %v150, 0.0
    %v154 = vadd.f32 %v145, %v153
    %155 = vst [vmem:[#allocation1] sm:$0xff] %v154
    %vm156 = vcmask 39968
    %s157 = scalar_lea.vmem [#allocation1], 4
    %v158 = vld [vmem:[%s157] ss:$0 sm:$0xff]
    %s159 = scalar_lea.vmem [#allocation0], 4
    %v160 = vld [vmem:[%s159] ss:$0 sm:$0xff]
    %v161 = vmul.f32 %v158, %v158
    %162 = vadd.xlane.f32.xlu0 %v161
    %v163 = vpop.xlane.xlu0 %162
    %v164 = vsub.f32 %v160, %v163
    %v165 = vrsqrt.pop %v164
    %v166 = vmul.f32 %v165, %v164
    %v167 = vmul.f32 %v166, %v165
    %v168 = vmul.f32 0.5, %v167
    %v169 = vsub.f32 1.5, %v168
    %v170 = vmul.f32 %v165, %v169
    %vm171 = vweird.f32 %v164
    %vm172 = vweird.f32 %v165
    %vm173 = vmor %vm171, %vm172
    %v174 = vsel %vm173, %v165, %v170
    %v175 = vld [vmem:[#allocation0] sm:$0xff]
    %v176 = vld [vmem:[#allocation1] sm:$0xff]
    %v177 = vmul.f32 %v176, %v158
    %178 = vadd.xlane.f32.xlu0 %v177
    %v179 = vpop.xlane.xlu0 %178
    %v180 = vsub.f32 %v175, %v179
    %v181 = vmul.f32 %v180, %v174
    %vm182 = vcmask 1047556
    %vm183 = vmand %vm156, %vm182
    %v184 = vsel %vm183, %v181, 0.0
    %v185 = vadd.f32 %v176, %v184
    %186 = vst [vmem:[#allocation1] sm:$0xff] %v185
    %vm187 = vcmask 48168
    %s188 = scalar_lea.vmem [#allocation1], 5
    %v189 = vld [vmem:[%s188] ss:$0 sm:$0xff]
    %s190 = scalar_lea.vmem [#allocation0], 5
    %v191 = vld [vmem:[%s190] ss:$0 sm:$0xff]
    %v192 = vmul.f32 %v189, %v189
    %193 = vadd.xlane.f32.xlu0 %v192
    %v194 = vpop.xlane.xlu0 %193
    %v195 = vsub.f32 %v191, %v194
    %v196 = vrsqrt.pop %v195
    %v197 = vmul.f32 %v196, %v195
    %v198 = vmul.f32 %v197, %v196
    %v199 = vmul.f32 0.5, %v198
    %v200 = vsub.f32 1.5, %v199
    %v201 = vmul.f32 %v196, %v200
    %vm202 = vweird.f32 %v195
    %vm203 = vweird.f32 %v196
    %vm204 = vmor %vm202, %vm203
    %v205 = vsel %vm204, %v196, %v201
    %v206 = vld [vmem:[#allocation0] sm:$0xff]
    %v207 = vld [vmem:[#allocation1] sm:$0xff]
    %v208 = vmul.f32 %v207, %v189
    %209 = vadd.xlane.f32.xlu0 %v208
    %v210 = vpop.xlane.xlu0 %209
    %v211 = vsub.f32 %v206, %v210
    %v212 = vmul.f32 %v211, %v205
    %vm213 = vcmask 1047557
    %vm214 = vmand %vm187, %vm213
    %v215 = vsel %vm214, %v212, 0.0
    %v216 = vadd.f32 %v207, %v215
    %217 = vst [vmem:[#allocation1] sm:$0xff] %v216
    %vm218 = vcmask 56368
    %s219 = scalar_lea.vmem [#allocation1], 6
    %v220 = vld [vmem:[%s219] ss:$0 sm:$0xff]
    %s221 = scalar_lea.vmem [#allocation0], 6
    %v222 = vld [vmem:[%s221] ss:$0 sm:$0xff]
    %v223 = vmul.f32 %v220, %v220
    %224 = vadd.xlane.f32.xlu0 %v223
    %v225 = vpop.xlane.xlu0 %224
    %v226 = vsub.f32 %v222, %v225
    %v227 = vrsqrt.pop %v226
    %v228 = vmul.f32 %v227, %v226
    %v229 = vmul.f32 %v228, %v227
    %v230 = vmul.f32 0.5, %v229
    %v231 = vsub.f32 1.5, %v230
    %v232 = vmul.f32 %v227, %v231
    %vm233 = vweird.f32 %v226
    %vm234 = vweird.f32 %v227
    %vm235 = vmor %vm233, %vm234
    %v236 = vsel %vm235, %v227, %v232
    %v237 = vld [vmem:[#allocation0] sm:$0xff]
    %v238 = vld [vmem:[#allocation1] sm:$0xff]
    %v239 = vmul.f32 %v238, %v220
    %240 = vadd.xlane.f32.xlu0 %v239
    %v241 = vpop.xlane.xlu0 %240
    %v242 = vsub.f32 %v237, %v241
    %v243 = vmul.f32 %v242, %v236
    %vm244 = vcmask 1047558
    %vm245 = vmand %vm218, %vm244
    %v246 = vsel %vm245, %v243, 0.0
    %v247 = vadd.f32 %v238, %v246
    %248 = vst [vmem:[#allocation1] sm:$0xff] %v247
    %vm249 = vcmask 64568
    %s250 = scalar_lea.vmem [#allocation1], 7
    %v251 = vld [vmem:[%s250] ss:$0 sm:$0xff]
    %s252 = scalar_lea.vmem [#allocation0], 7
    %v253 = vld [vmem:[%s252] ss:$0 sm:$0xff]
    %v254 = vmul.f32 %v251, %v251
    %255 = vadd.xlane.f32.xlu0 %v254
    %v256 = vpop.xlane.xlu0 %255
    %v257 = vsub.f32 %v253, %v256
    %v258 = vrsqrt.pop %v257
    %v259 = vmul.f32 %v258, %v257
    %v260 = vmul.f32 %v259, %v258
    %v261 = vmul.f32 0.5, %v260
    %v262 = vsub.f32 1.5, %v261
    %v263 = vmul.f32 %v258, %v262
    %vm264 = vweird.f32 %v257
    %vm265 = vweird.f32 %v258
    %vm266 = vmor %vm264, %vm265
    %v267 = vsel %vm266, %v258, %v263
    %v268 = vld [vmem:[#allocation0] sm:$0xff]
    %v269 = vld [vmem:[#allocation1] sm:$0xff]
    %v270 = vmul.f32 %v269, %v251
    %271 = vadd.xlane.f32.xlu0 %v270
    %v272 = vpop.xlane.xlu0 %271
    %v273 = vsub.f32 %v268, %v272
    %v274 = vmul.f32 %v273, %v267
    %vm275 = vcmask 1047559
    %vm276 = vmand %vm249, %vm275
    %v277 = vsel %vm276, %v274, 0.0
    %v278 = vadd.f32 %v269, %v277
    %279 = vst [vmem:[#allocation1] sm:$0xff] %v278
    // Predicated region
    $region36: #{custom-call.4} parent=1 // pred_check
      _
    $region37: #{custom-call.4} parent=1 // pred_check_branch
      %281 = sbr.rel (0) target = $region39
    $region38: #{custom-call.4} parent=1 // pred_region
      // Predicated region
      $region40: #{custom-call.4} parent=38 // pred_check
        _
      $region41: #{custom-call.4} parent=38 // pred_check_branch
        %283 = sbr.rel (0) target = $region43
      $region42: #{custom-call.4} parent=38 // pred_region
        // Predicated region
        $region55: #{custom-call.4} parent=42 // pred_check
          _
        $region56: #{custom-call.4} parent=42 // pred_check_branch
          %299 = sbr.rel (0) target = $region58
        $region57: #{custom-call.4} parent=42 // pred_region
          loop: start=0, step=1, limit=1
          $region59: #{custom-call.4} parent=57 // loop_pre_header
            _
          $region60: #{custom-call.4} parent=57 // loop_header
            %s301 = sphi 0, %s305
            %p302 = scmp.ge.s32.totalorder %s301, 1
            %s306 = sphi [#allocation1], [#allocation1]
            %s307 = sphi %s1, %s1
          $region61: #{custom-call.4} parent=57 // loop_header_branch
            %304 = sbr.rel (%p302) target = $region65
          $region62: #{custom-call.4} parent=57 // loop_body
            %v308 = vld [vmem:[%s306] sm:$0xff]
            %309 = vst [vmem:[%s307] sm:$0xff] %v308
          $region63: #{custom-call.4} parent=57 // loop_footer
            %s305 = sadd.s32 1, %s301
          $region64: #{custom-call.4} parent=57 // loop_footer_branch
            %300 = sbr.rel target = $region60
          $region65: #{custom-call.4} parent=57 // loop_exit
            _
        $region58: #{custom-call.4} parent=42 // pred_fallthru
          _
        // Predicated region
        $region66: #{custom-call.4} parent=42 // pred_check
          _
        $region67: #{custom-call.4} parent=42 // pred_check_branch
          %311 = sbr.rel target = $region69
        $region68: #{custom-call.4} parent=42 // pred_region
          _
        $region69: #{custom-call.4} parent=42 // pred_fallthru
          _
      $region43: #{custom-call.4} parent=38 // pred_fallthru
        _
      // Predicated region
      $region44: #{custom-call.4} parent=38 // pred_check
        _
      $region45: #{custom-call.4} parent=38 // pred_check_branch
        %285 = sbr.rel target = $region47
      $region46: #{custom-call.4} parent=38 // pred_region
        %s287 = ssub.s32 256, 1
        loop: start=0, step=1, limit=1
        $region48: #{custom-call.4} parent=46 // loop_pre_header
          _
        $region49: #{custom-call.4} parent=46 // loop_header
          %s289 = sphi 0, %s293
          %p290 = scmp.ge.s32.totalorder %s289, 1
          %s294 = sphi [#allocation1], [#allocation1]
          %s295 = sphi %s1, %s1
        $region50: #{custom-call.4} parent=46 // loop_header_branch
          %292 = sbr.rel (%p290) target = $region54
        $region51: #{custom-call.4} parent=46 // loop_body
          %v296 = vld [vmem:[%s294] sm:%s287]
          %297 = vst [vmem:[%s295] sm:%s287] %v296
        $region52: #{custom-call.4} parent=46 // loop_footer
          %s293 = sadd.s32 1, %s289
        $region53: #{custom-call.4} parent=46 // loop_footer_branch
          %288 = sbr.rel target = $region49
        $region54: #{custom-call.4} parent=46 // loop_exit
          _
      $region47: #{custom-call.4} parent=38 // pred_fallthru
        _
    $region39: #{custom-call.4} parent=1 // pred_fallthru
      _
    %312 = vnop

// kernel: custom-call.5
$region0: #{custom-call.5}
  %s0 = inlined_call_operand.vmem [shape: f32[1,8,8], index: 0, kind: input, shape index: {}]
  %s1 = inlined_call_operand.vmem [shape: f32[1,8,8], index: 1, kind: output, shape index: {}]
  $region1: #{custom-call.5} parent=0
    #allocation0 [shape = 'u8[4096]{0}', space=vmem, size = 0x1000, scoped, tag = 'operand span for operand 0']
    #allocation1 [shape = 'u8[4096]{0}', space=vmem, size = 0x1000, scoped, tag = 'operand span for operand 1']
    #allocation2 [shape = 'f32[8,8]{1,0}', space=vmem, size = 0x1000, scoped, tag = 'rescaled input a']
    // Predicated region
    $region2: #{custom-call.5} parent=1 // pred_check
      _
    $region3: #{custom-call.5} parent=1 // pred_check_branch
      %3 = sbr.rel (0) target = $region5
    $region4: #{custom-call.5} parent=1 // pred_region
      // Predicated region
      $region6: #{custom-call.5} parent=4 // pred_check
        _
      $region7: #{custom-call.5} parent=4 // pred_check_branch
        %5 = sbr.rel (0) target = $region9
      $region8: #{custom-call.5} parent=4 // pred_region
        // Predicated region
        $region21: #{custom-call.5} parent=8 // pred_check
          _
        $region22: #{custom-call.5} parent=8 // pred_check_branch
          %21 = sbr.rel (0) target = $region24
        $region23: #{custom-call.5} parent=8 // pred_region
          loop: start=0, step=1, limit=1
          $region25: #{custom-call.5} parent=23 // loop_pre_header
            _
          $region26: #{custom-call.5} parent=23 // loop_header
            %s23 = sphi 0, %s27
            %p24 = scmp.ge.s32.totalorder %s23, 1
            %s28 = sphi %s0, %s0
            %s29 = sphi [#allocation0], [#allocation0]
          $region27: #{custom-call.5} parent=23 // loop_header_branch
            %26 = sbr.rel (%p24) target = $region31
          $region28: #{custom-call.5} parent=23 // loop_body
            %v30 = vld [vmem:[%s28] sm:$0xff]
            %31 = vst [vmem:[%s29] sm:$0xff] %v30
          $region29: #{custom-call.5} parent=23 // loop_footer
            %s27 = sadd.s32 1, %s23
          $region30: #{custom-call.5} parent=23 // loop_footer_branch
            %22 = sbr.rel target = $region26
          $region31: #{custom-call.5} parent=23 // loop_exit
            _
        $region24: #{custom-call.5} parent=8 // pred_fallthru
          _
        // Predicated region
        $region32: #{custom-call.5} parent=8 // pred_check
          _
        $region33: #{custom-call.5} parent=8 // pred_check_branch
          %33 = sbr.rel target = $region35
        $region34: #{custom-call.5} parent=8 // pred_region
          _
        $region35: #{custom-call.5} parent=8 // pred_fallthru
          _
      $region9: #{custom-call.5} parent=4 // pred_fallthru
        _
      // Predicated region
      $region10: #{custom-call.5} parent=4 // pred_check
        _
      $region11: #{custom-call.5} parent=4 // pred_check_branch
        %7 = sbr.rel target = $region13
      $region12: #{custom-call.5} parent=4 // pred_region
        %s9 = ssub.s32 256, 1
        loop: start=0, step=1, limit=1
        $region14: #{custom-call.5} parent=12 // loop_pre_header
          _
        $region15: #{custom-call.5} parent=12 // loop_header
          %s11 = sphi 0, %s15
          %p12 = scmp.ge.s32.totalorder %s11, 1
          %s16 = sphi %s0, %s0
          %s17 = sphi [#allocation0], [#allocation0]
        $region16: #{custom-call.5} parent=12 // loop_header_branch
          %14 = sbr.rel (%p12) target = $region20
        $region17: #{custom-call.5} parent=12 // loop_body
          %v18 = vld [vmem:[%s16] sm:%s9]
          %19 = vst [vmem:[%s17] sm:%s9] %v18
        $region18: #{custom-call.5} parent=12 // loop_footer
          %s15 = sadd.s32 1, %s11
        $region19: #{custom-call.5} parent=12 // loop_footer_branch
          %10 = sbr.rel target = $region15
        $region20: #{custom-call.5} parent=12 // loop_exit
          _
      $region13: #{custom-call.5} parent=4 // pred_fallthru
        _
    $region5: #{custom-call.5} parent=1 // pred_fallthru
      _
    %34 = vnop
    %v35 = vlaneseq
    %v36 = vand.u32 %v35, 127
    %vm37 = vcmp.lt.s32.totalorder %v36, 8
    %v38 = vlaneseq
    %v39 = vshrl.u32 %v38, 7
    %vm41 = vcmp.eq.s32.totalorder %v39, %v36
    %v42 = vld [vmem:[#allocation0] sm:$0xff]
    %v43 = vsel %vm41, %v42, 0.0
    %44 = vadd.xlane.f32.xlu0 %v43
    %v45 = vpop.xlane.xlu0 %44
    %vm46 = vcmp.ge.s32.totalorder %v39, %v36
    %vm47 = vmand %vm46, %vm37
    %v48 = vsel %vm47, %v42, 0.0
    %v49 = vrcp.pop %v45
    %v50 = vmul.f32 %v45, %v49
    %v51 = vsub.f32 1.0, %v50
    %v52 = vmul.f32 %v49, %v51
    %v53 = vadd.f32 %v49, %v52
    %vm54 = vweird.f32 %v45
    %vm55 = vweird.f32 %v49
    %vm56 = vmor %vm54, %vm55
    %v57 = vsel %vm56, %v49, %v53
    %v58 = vand.u32 2147483647, %v45
    %vm59 = vcmp.eq.f32.partialorder %v58, 8.507059e+37
    %v60 = vand.u32 %v45, 2147483648
    %v61 = vor.u32 1.1754944e-38, %v60
    %v62 = vsel %vm59, %v61, %v57
    %v63 = vmul.f32 %v48, %v62
    %64 = vst [vmem:[#allocation2] sm:$0xff] %v63
    %v65 = vlaneseq
    %v66 = vand.u32 %v65, 127
    %v67 = vlaneseq
    %v68 = vshrl.u32 %v67, 7
    %vm70 = vcmp.eq.s32.totalorder %v66, %v68
    %v71 = vlaneseq
    %v72 = vand.u32 %v71, 127
    %vm73 = vcmp.eq.s32.totalorder %v72, 0
    %v74 = vsel %vm73, 1.0, -1.0
    %v75 = vsel %vm70, %v74, 0.0
    %s76 = scalar_lea.vmem [#allocation2], 1
    %v77 = vld [vmem:[%s76] ss:$0 sm:$0xff]
    %v78 = vxor.u32 %v77, 2147483648
    %v79 = vlaneseq
    %v80 = vand.u32 %v79, 127
    %vm81 = vcmp.eq.s32.totalorder %v80, 1
    %v82 = vmul.f32 %v78, %v75
    %83 = vadd.xlane.f32.xlu0 %v82
    %v84 = vpop.xlane.xlu0 %83
    %v85 = vsel %vm81, %v84, %v75
    %s86 = scalar_lea.vmem [#allocation2], 2
    %v87 = vld [vmem:[%s86] ss:$0 sm:$0xff]
    %v88 = vxor.u32 %v87, 2147483648
    %v89 = vlaneseq
    %v90 = vand.u32 %v89, 127
    %vm91 = vcmp.eq.s32.totalorder %v90, 2
    %v92 = vmul.f32 %v88, %v85
    %93 = vadd.xlane.f32.xlu0 %v92
    %v94 = vpop.xlane.xlu0 %93
    %v95 = vsel %vm91, %v94, %v85
    %s96 = scalar_lea.vmem [#allocation2], 3
    %v97 = vld [vmem:[%s96] ss:$0 sm:$0xff]
    %v98 = vxor.u32 %v97, 2147483648
    %v99 = vlaneseq
    %v100 = vand.u32 %v99, 127
    %vm101 = vcmp.eq.s32.totalorder %v100, 3
    %v102 = vmul.f32 %v98, %v95
    %103 = vadd.xlane.f32.xlu0 %v102
    %v104 = vpop.xlane.xlu0 %103
    %v105 = vsel %vm101, %v104, %v95
    %s106 = scalar_lea.vmem [#allocation2], 4
    %v107 = vld [vmem:[%s106] ss:$0 sm:$0xff]
    %v108 = vxor.u32 %v107, 2147483648
    %v109 = vlaneseq
    %v110 = vand.u32 %v109, 127
    %vm111 = vcmp.eq.s32.totalorder %v110, 4
    %v112 = vmul.f32 %v108, %v105
    %113 = vadd.xlane.f32.xlu0 %v112
    %v114 = vpop.xlane.xlu0 %113
    %v115 = vsel %vm111, %v114, %v105
    %s116 = scalar_lea.vmem [#allocation2], 5
    %v117 = vld [vmem:[%s116] ss:$0 sm:$0xff]
    %v118 = vxor.u32 %v117, 2147483648
    %v119 = vlaneseq
    %v120 = vand.u32 %v119, 127
    %vm121 = vcmp.eq.s32.totalorder %v120, 5
    %v122 = vmul.f32 %v118, %v115
    %123 = vadd.xlane.f32.xlu0 %v122
    %v124 = vpop.xlane.xlu0 %123
    %v125 = vsel %vm121, %v124, %v115
    %s126 = scalar_lea.vmem [#allocation2], 6
    %v127 = vld [vmem:[%s126] ss:$0 sm:$0xff]
    %v128 = vxor.u32 %v127, 2147483648
    %v129 = vlaneseq
    %v130 = vand.u32 %v129, 127
    %vm131 = vcmp.eq.s32.totalorder %v130, 6
    %v132 = vmul.f32 %v128, %v125
    %133 = vadd.xlane.f32.xlu0 %v132
    %v134 = vpop.xlane.xlu0 %133
    %v135 = vsel %vm131, %v134, %v125
    %s136 = scalar_lea.vmem [#allocation2], 7
    %v137 = vld [vmem:[%s136] ss:$0 sm:$0xff]
    %v138 = vxor.u32 %v137, 2147483648
    %v139 = vlaneseq
    %v140 = vand.u32 %v139, 127
    %vm141 = vcmp.eq.s32.totalorder %v140, 7
    %v142 = vmul.f32 %v138, %v135
    %143 = vadd.xlane.f32.xlu0 %v142
    %v144 = vpop.xlane.xlu0 %143
    %v145 = vsel %vm141, %v144, %v135
    %v146 = vrcp.pop %v45
    %v147 = vmul.f32 %v45, %v146
    %v148 = vsub.f32 1.0, %v147
    %v149 = vmul.f32 %v146, %v148
    %v150 = vadd.f32 %v146, %v149
    %vm151 = vweird.f32 %v45
    %vm152 = vweird.f32 %v146
    %vm153 = vmor %vm151, %vm152
    %v154 = vsel %vm153, %v146, %v150
    %v155 = vand.u32 2147483647, %v45
    %vm156 = vcmp.eq.f32.partialorder %v155, 8.507059e+37
    %v157 = vand.u32 %v45, 2147483648
    %v158 = vor.u32 1.1754944e-38, %v157
    %v159 = vsel %vm156, %v158, %v154
    %v160 = vmul.f32 %v145, %v159
    %vm161 = vweird.f32 %v45
    %v162 = vsel %vm161, %v145, %v160
    %163 = vst [vmem:[#allocation1] sm:$0xff] %v162
    // Predicated region
    $region36: #{custom-call.5} parent=1 // pred_check
      _
    $region37: #{custom-call.5} parent=1 // pred_check_branch
      %165 = sbr.rel (0) target = $region39
    $region38: #{custom-call.5} parent=1 // pred_region
      // Predicated region
      $region40: #{custom-call.5} parent=38 // pred_check
        _
      $region41: #{custom-call.5} parent=38 // pred_check_branch
        %167 = sbr.rel (0) target = $region43
      $region42: #{custom-call.5} parent=38 // pred_region
        // Predicated region
        $region55: #{custom-call.5} parent=42 // pred_check
          _
        $region56: #{custom-call.5} parent=42 // pred_check_branch
          %183 = sbr.rel (0) target = $region58
        $region57: #{custom-call.5} parent=42 // pred_region
          loop: start=0, step=1, limit=1
          $region59: #{custom-call.5} parent=57 // loop_pre_header
            _
          $region60: #{custom-call.5} parent=57 // loop_header
            %s185 = sphi 0, %s189
            %p186 = scmp.ge.s32.totalorder %s185, 1
            %s190 = sphi [#allocation1], [#allocation1]
            %s191 = sphi %s1, %s1
          $region61: #{custom-call.5} parent=57 // loop_header_branch
            %188 = sbr.rel (%p186) target = $region65
          $region62: #{custom-call.5} parent=57 // loop_body
            %v192 = vld [vmem:[%s190] sm:$0xff]
            %193 = vst [vmem:[%s191] sm:$0xff] %v192
          $region63: #{custom-call.5} parent=57 // loop_footer
            %s189 = sadd.s32 1, %s185
          $region64: #{custom-call.5} parent=57 // loop_footer_branch
            %184 = sbr.rel target = $region60
          $region65: #{custom-call.5} parent=57 // loop_exit
            _
        $region58: #{custom-call.5} parent=42 // pred_fallthru
          _
        // Predicated region
        $region66: #{custom-call.5} parent=42 // pred_check
          _
        $region67: #{custom-call.5} parent=42 // pred_check_branch
          %195 = sbr.rel target = $region69
        $region68: #{custom-call.5} parent=42 // pred_region
          _
        $region69: #{custom-call.5} parent=42 // pred_fallthru
          _
      $region43: #{custom-call.5} parent=38 // pred_fallthru
        _
      // Predicated region
      $region44: #{custom-call.5} parent=38 // pred_check
        _
      $region45: #{custom-call.5} parent=38 // pred_check_branch
        %169 = sbr.rel target = $region47
      $region46: #{custom-call.5} parent=38 // pred_region
        %s171 = ssub.s32 256, 1
        loop: start=0, step=1, limit=1
        $region48: #{custom-call.5} parent=46 // loop_pre_header
          _
        $region49: #{custom-call.5} parent=46 // loop_header
          %s173 = sphi 0, %s177
          %p174 = scmp.ge.s32.totalorder %s173, 1
          %s178 = sphi [#allocation1], [#allocation1]
          %s179 = sphi %s1, %s1
        $region50: #{custom-call.5} parent=46 // loop_header_branch
          %176 = sbr.rel (%p174) target = $region54
        $region51: #{custom-call.5} parent=46 // loop_body
          %v180 = vld [vmem:[%s178] sm:%s171]
          %181 = vst [vmem:[%s179] sm:%s171] %v180
        $region52: #{custom-call.5} parent=46 // loop_footer
          %s177 = sadd.s32 1, %s173
        $region53: #{custom-call.5} parent=46 // loop_footer_branch
          %172 = sbr.rel target = $region49
        $region54: #{custom-call.5} parent=46 // loop_exit
          _
      $region47: #{custom-call.5} parent=38 // pred_fallthru
        _
    $region39: #{custom-call.5} parent=1 // pred_fallthru
      _
    %196 = vnop

// kernel: score_statistics_window.1
$region0: #{score_statistics_window.1}
  #allocation0 [shape = 'u32[]', space=smem, size = 0x4, offset = 0x4, fixed_abs, tag = 'smem constant byte address 0x4 - core index']
  #allocation1 [shape = 'u32[72,128]{1,0:T(1,128)}', space=vmem, size = 0x9000, scoped, tag = 'internal scratch']
  %s0 = inlined_call_operand.vmem [shape: f32[8,128], index: 0, kind: input, shape index: {}]
  %s1 = inlined_call_operand.hbm [shape: f32[8,128], index: 1, kind: input, shape index: {}]
  %s2 = inlined_call_operand.hbm [shape: f32[8,128], index: 2, kind: input, shape index: {}]
  %s3 = inlined_call_operand.vmem [shape: f32[1,8,8], index: 3, kind: output, shape index: {0}]
  %s4 = inlined_call_operand.vmem [shape: f32[1,8,8], index: 4, kind: output, shape index: {1}]
  %s5 = inlined_call_operand.vmem [shape: f32[1,8,1], index: 5, kind: output, shape index: {2}]
  %6 = xla_tuple %s3, %s4, %s5
  %s7 = sld [smem:[#allocation0]]
  $region50: #{score_statistics_window.1} parent=0
    _
  %s9 = ssub.s32 1, %s7
  %s10 = scalar_select 0, %s9, %s7
  $region1: #{score_statistics_window.1} parent=0
    #allocation2 [shape = 'u8[4096]{0}', space=vmem, size = 0x1000, scoped, tag = 'input window, operand 1, single buffered']
    #allocation3 [shape = 's32[1]{0}', space=sflag, size = 0x4, scoped, tag = 'scoped memory for score_statistics_window.1']
    #allocation4 [shape = 'u8[4096]{0}', space=vmem, size = 0x1000, scoped, tag = 'input window, operand 2, single buffered']
    #allocation5 [shape = 's32[1]{0}', space=sflag, size = 0x4, scoped, tag = 'scoped memory for score_statistics_window.1']
    %11 = vsyncpa [#allocation3], 0
    %12 = vsyncpa [#allocation5], 0
    // Predicated region
    $region2: #{score_statistics_window.1} parent=1 // pred_check
      _
    $region3: #{score_statistics_window.1} parent=1 // pred_check_branch
      %14 = sbr.rel (0) target = $region5
    $region4: #{score_statistics_window.1} parent=1 // pred_region
      %s15 = sadd.s32 0, 0
      %p16 = scmp.lt.s32.totalorder %s15, 0
      %s17 = scalar_select %p16, %s15, 0
      %s18 = smul.addr %s17, 8
      %s19 = scalar_lea.vmem %s0, %s18
      %s20 = sadd.s32 0, 0
    $region5: #{score_statistics_window.1} parent=1 // pred_fallthru
      _
    // Predicated region
    $region6: #{score_statistics_window.1} parent=1 // pred_check
      _
    $region7: #{score_statistics_window.1} parent=1 // pred_check_branch
      %22 = sbr.rel (0) target = $region9
    $region8: #{score_statistics_window.1} parent=1 // pred_region
      %s23 = sadd.s32 0, 0
      %25 = vsyncadd [#allocation3], 0
      %s26 = smul.addr %s23, 8
      %s27 = scalar_lea.hbm %s1, %s26
      %s29 = sshll.u32 %s27, 4
      %s30 = int_to_ptr.hbm [resolvable:$true] %s29
      %s31 = sshll.u32 [#allocation2], 4
      %s32 = int_to_ptr.vmem [resolvable:$true] %s31
      %34 = dma.hbm_to_vmem [thread:$0]  %s30, 128, %s32, [#allocation3]
    $region9: #{score_statistics_window.1} parent=1 // pred_fallthru
      _
    // Predicated region
    $region10: #{score_statistics_window.1} parent=1 // pred_check
      _
    $region11: #{score_statistics_window.1} parent=1 // pred_check_branch
      %36 = sbr.rel (0) target = $region13
    $region12: #{score_statistics_window.1} parent=1 // pred_region
      %s37 = sadd.s32 0, 0
      %39 = vsyncadd [#allocation5], 0
      %s40 = smul.addr %s37, 8
      %s41 = scalar_lea.hbm %s2, %s40
      %s43 = sshll.u32 %s41, 4
      %s44 = int_to_ptr.hbm [resolvable:$true] %s43
      %s45 = sshll.u32 [#allocation4], 4
      %s46 = int_to_ptr.vmem [resolvable:$true] %s45
      %48 = dma.hbm_to_vmem [thread:$0]  %s44, 128, %s46, [#allocation5]
    $region13: #{score_statistics_window.1} parent=1 // pred_fallthru
      _
    // Predicated region
    $region14: #{score_statistics_window.1} parent=1 // pred_check
      _
    $region15: #{score_statistics_window.1} parent=1 // pred_check_branch
      %50 = sbr.rel (0) target = $region17
    $region16: #{score_statistics_window.1} parent=1 // pred_region
      %52 = dma.done [#allocation3], 128
    $region17: #{score_statistics_window.1} parent=1 // pred_fallthru
      _
    // Predicated region
    $region18: #{score_statistics_window.1} parent=1 // pred_check
      _
    $region19: #{score_statistics_window.1} parent=1 // pred_check_branch
      %54 = sbr.rel (0) target = $region21
    $region20: #{score_statistics_window.1} parent=1 // pred_region
      %56 = dma.done [#allocation5], 128
    $region21: #{score_statistics_window.1} parent=1 // pred_fallthru
      _
    %s57 = sadd.s32 0, 0
    %p58 = scmp.lt.s32.totalorder %s57, 0
    %s59 = scalar_select %p58, %s57, 0
    %s60 = smul.addr %s59, 8
    %s61 = scalar_lea.vmem %s0, %s60
    %s62 = sadd.s32 0, 0
    %p63 = scmp.lt.s32.totalorder %s62, 0
    %s64 = scalar_select %p63, %s62, 0
    %s65 = smul.addr %s64, 8
    %s66 = scalar_lea.vmem %s0, %s65
    %s67 = sadd.s32 0, 0
    %s68 = sadd.s32 0, 0
    %s69 = sadd.s32 0, 0
    %p70 = scmp.eq.s32.totalorder 0, 0
    // Predicated region
    $region22: #{score_statistics_window.1} parent=1 // pred_check
      %p71 = pneg %p70
    $region23: #{score_statistics_window.1} parent=1 // pred_check_branch
      %73 = sbr.rel (%p71) target = $region25
    $region24: #{score_statistics_window.1} parent=1 // pred_region
      %vm74 = vcmask 64512
      %75 = vst.msk [vmem:[%s3] sm:$0xff] %vm74, 0.0
      %76 = vst.msk [vmem:[%s4] sm:$0xff] %vm74, 0.0
      %vm77 = vcmask 7168
      %78 = vst.msk [vmem:[%s5] sm:$0xff] %vm77, 0.0
    $region25: #{score_statistics_window.1} parent=1 // pred_fallthru
      _
    %v79 = vld [vmem:[%s66] sm:$0xff]
    %v80 = vld [vmem:[#allocation2] sm:$0xff]
    %v81 = vld [vmem:[#allocation4] sm:$0xff]
    %v82 = vsub.f32 %v80, %v81
    %v83 = vld [vmem:[%s3] sm:$0xff]
    %84 = vmatpush.xpose.msra.mxu0 0.0
    %85 = vmatpush.xpose.msra.mxu0 0.0
    %86 = vmatpush.xpose.msra.mxu0 0.0
    %87 = vmatpush.xpose.msra.mxu0 0.0
    %88 = vmatpush.xpose.msra.mxu0 0.0
    %89 = vmatpush.xpose.msra.mxu0 0.0
    %90 = vmatpush.xpose.msra.mxu0 0.0
    %91 = vmatpush.xpose.msra.mxu0 0.0
    %92 = vmatpush.xpose.msra.mxu0 0.0
    %93 = vmatpush.xpose.msra.mxu0 0.0
    %94 = vmatpush.xpose.msra.mxu0 0.0
    %95 = vmatpush.xpose.msra.mxu0 0.0
    %96 = vmatpush.xpose.msra.mxu0 0.0
    %97 = vmatpush.xpose.msra.mxu0 0.0
    %98 = vmatpush.xpose.msra.mxu0 0.0
    %99 = vmatpush.xpose.msra.mxu0 %v79
    %100 = vmatmul.f32.gmra.mxu0 %v79
    %v101 = vpop.f32.mrf.mxu0
    %v102 = vadd.f32 0.0, %v101
    %103 = vdwg.mxu0
    %v104 = vadd.f32 %v83, %v102
    %vm105 = vcmask 64512
    %106 = vst.msk [vmem:[%s3] sm:$0xff] %vm105, %v104
    %v107 = vld [vmem:[%s4] sm:$0xff]
    %108 = vmatpush.xpose.msra.mxu0 0.0
    %109 = vmatpush.xpose.msra.mxu0 0.0
    %110 = vmatpush.xpose.msra.mxu0 0.0
    %111 = vmatpush.xpose.msra.mxu0 0.0
    %112 = vmatpush.xpose.msra.mxu0 0.0
    %113 = vmatpush.xpose.msra.mxu0 0.0
    %114 = vmatpush.xpose.msra.mxu0 0.0
    %115 = vmatpush.xpose.msra.mxu0 0.0
    %116 = vmatpush.xpose.msra.mxu0 0.0
    %117 = vmatpush.xpose.msra.mxu0 0.0
    %118 = vmatpush.xpose.msra.mxu0 0.0
    %119 = vmatpush.xpose.msra.mxu0 0.0
    %120 = vmatpush.xpose.msra.mxu0 0.0
    %121 = vmatpush.xpose.msra.mxu0 0.0
    %122 = vmatpush.xpose.msra.mxu0 0.0
    %123 = vmatpush.xpose.msra.mxu0 %v79
    %124 = vmatmul.f32.gmra.mxu0 %v82
    %v125 = vpop.f32.mrf.mxu0
    %v126 = vadd.f32 0.0, %v125
    %127 = vdwg.mxu0
    %v128 = vadd.f32 %v107, %v126
    %129 = vst.msk [vmem:[%s4] sm:$0xff] %vm105, %v128
    %v130 = vld [vmem:[%s5] sm:$0xff]
    %v131 = vmul.f32 %v82, %v82
    %132 = vadd.xlane.f32.xlu0 %v131
    %v133 = vpop.xlane.xlu0 %132
    %v134 = vadd.f32 %v130, %v133
    %vm135 = vcmask 7168
    %136 = vst.msk [vmem:[%s5] sm:$0xff] %vm135, %v134
    // Predicated region
    $region26: #{score_statistics_window.1} parent=1 // pred_check
      _
    $region27: #{score_statistics_window.1} parent=1 // pred_check_branch
      %138 = sbr.rel (0) target = $region29
    $region28: #{score_statistics_window.1} parent=1 // pred_region
      _
    $region29: #{score_statistics_window.1} parent=1 // pred_fallthru
      _
    // Predicated region
    $region30: #{score_statistics_window.1} parent=1 // pred_check
      _
    $region31: #{score_statistics_window.1} parent=1 // pred_check_branch
      %140 = sbr.rel (0) target = $region33
    $region32: #{score_statistics_window.1} parent=1 // pred_region
      _
    $region33: #{score_statistics_window.1} parent=1 // pred_fallthru
      _
    // Predicated region
    $region34: #{score_statistics_window.1} parent=1 // pred_check
      _
    $region35: #{score_statistics_window.1} parent=1 // pred_check_branch
      %142 = sbr.rel (0) target = $region37
    $region36: #{score_statistics_window.1} parent=1 // pred_region
      _
    $region37: #{score_statistics_window.1} parent=1 // pred_fallthru
      _
    // Predicated region
    $region38: #{score_statistics_window.1} parent=1 // pred_check
      _
    $region39: #{score_statistics_window.1} parent=1 // pred_check_branch
      %144 = sbr.rel (0) target = $region41
    $region40: #{score_statistics_window.1} parent=1 // pred_region
      _
    $region41: #{score_statistics_window.1} parent=1 // pred_fallthru
      _
    // Predicated region
    $region42: #{score_statistics_window.1} parent=1 // pred_check
      _
    $region43: #{score_statistics_window.1} parent=1 // pred_check_branch
      %146 = sbr.rel (0) target = $region45
    $region44: #{score_statistics_window.1} parent=1 // pred_region
      _
    $region45: #{score_statistics_window.1} parent=1 // pred_fallthru
      _
    // Predicated region
    $region46: #{score_statistics_window.1} parent=1 // pred_check
      _
    $region47: #{score_statistics_window.1} parent=1 // pred_check_branch
      %148 = sbr.rel (0) target = $region49
    $region48: #{score_statistics_window.1} parent=1 // pred_region
      _
    $region49: #{score_statistics_window.1} parent=1 // pred_fallthru
      _
    %149 = vsyncpa [#allocation3], 1
    %150 = vsyncpa [#allocation5], 1

</llo_original>
